<compile_context>
chip_gen: v7x
topology: tpu7x:2x2x1
jax: 0.10.0
libtpu: 0.0.40
codegen_flags: <defaults>
</compile_context>

<pallas_src>
import functools

import jax
import jax.numpy as jnp
import numpy as np
from jax.experimental import pallas as pl
from jax.experimental.pallas import tpu as pltpu


def _round_up(x, m):
    return ((x + m - 1) // m) * m


def _pad_axis(a, axis, target):
    if a.shape[axis] == target:
        return a
    cfg = [(0, 0)] * a.ndim
    cfg[axis] = (0, target - a.shape[axis])
    return jnp.pad(a, cfg)


# ---------------------------------------------------------------------------
# SR branch kernel: depthwise conv (kernel = stride = sr) with BatchNorm (eval)
# already folded into w/b by the wrapper.
# ---------------------------------------------------------------------------
def _sr_kernel(patch_ref, w_ref, b_ref, o_ref, *, ksq):
    w = w_ref[...].astype(jnp.float32)                          # (ksq, Cp)
    acc = b_ref[...].astype(jnp.float32)                        # (1, Cp) bias
    acc = acc + patch_ref[0, 0].astype(jnp.float32) * w[0:1, :]  # (Nk, Cp)
    for p in range(1, ksq):                                     # unrolled taps
        acc = acc + patch_ref[0, p].astype(jnp.float32) * w[p:p + 1, :]
    o_ref[0] = acc.astype(o_ref.dtype)


# ---------------------------------------------------------------------------
# Attention kernel: one (batch, query-tile, head) step.
#   q/k/v projections contract over Cp (>=128) -> MXU-friendly.
#   Per-head context is folded into its row-block of the output projection and
#   accumulated across the head grid axis in an f32 scratch accumulator.
# ---------------------------------------------------------------------------
def _attn_kernel(x_ref, xkv_ref, wq_ref, wk_ref, wv_ref, wp_ref, bp_ref,
                 rel_ref, o_ref, acc_ref, *, num_heads):
    h = pl.program_id(2)

    @pl.when(h == 0)
    def _init():
        # proj bias folded into the accumulator init
        acc_ref[...] = jnp.broadcast_to(bp_ref[...].astype(jnp.float32),
                                        acc_ref.shape)

    x = x_ref[0]                      # (tq, Cp)  native dtype
    xkv = xkv_ref[0]                  # (Nk, Cp)
    in_dt = x.dtype

    # per-head projections (softmax scale pre-folded into wq)
    q = jnp.dot(x, wq_ref[0], preferred_element_type=jnp.float32)    # (tq, qk_hd)
    k = jnp.dot(xkv, wk_ref[0], preferred_element_type=jnp.float32)  # (Nk, qk_hd)
    v = jnp.dot(xkv, wv_ref[0], preferred_element_type=jnp.float32)  # (Nk, v_hd)

    # scores: contract the head dims of q and k directly (no explicit .T)
    s = jax.lax.dot_general(q.astype(in_dt), k.astype(in_dt),
                            (((1,), (1,)), ((), ())),
                            preferred_element_type=jnp.float32)      # (tq, Nk)
    s = s + rel_ref[0].astype(jnp.float32)

    # f32 softmax; normalize after p@v via EUP reciprocal (free slot)
    m = jnp.max(s, axis=-1, keepdims=True)
    p = jnp.exp(s - m)
    l = jnp.sum(p, axis=-1, keepdims=True)
    ctx = jnp.dot(p.astype(in_dt), v.astype(in_dt),
                  preferred_element_type=jnp.float32)                # (tq, v_hd)
    ctx = ctx * pl.reciprocal(l, approx=True)

    # this head's contribution through its row-block of the output projection
    acc_ref[...] += jnp.dot(ctx.astype(in_dt), wp_ref[0],
                            preferred_element_type=jnp.float32)      # (tq, Cp)

    @pl.when(h == num_heads - 1)
    def _finish():
        o_ref[0] = acc_ref[...].astype(o_ref.dtype)


# ---------------------------------------------------------------------------
# Wrapper
# ---------------------------------------------------------------------------
def attention_forward(x, H, W, relative_pos, params, *, num_heads, sr_ratio):
    B, N, C = x.shape
    qk_dim = params["wq"].shape[1]
    qk_hd = qk_dim // num_heads
    v_hd = C // num_heads
    scale = (C // num_heads) ** (-0.5)       # PyTorch: head_dim = dim // num_heads
    Cp = _round_up(C, 128)
    dtype = x.dtype

    x_pad = _pad_axis(x, 2, Cp)              # (B, N, Cp)

    # ---- per-head weight layout: head leading, channels padded to Cp ----
    wq_h = _pad_axis((params["wq"] * scale).reshape(C, num_heads, qk_hd)
                     .transpose(1, 0, 2), 1, Cp)                       # (h, Cp, qk_hd)
    wk_h = _pad_axis(params["wk"].reshape(C, num_heads, qk_hd)
                     .transpose(1, 0, 2), 1, Cp)                       # (h, Cp, qk_hd)
    wv_h = _pad_axis(params["wv"].reshape(C, num_heads, v_hd)
                     .transpose(1, 0, 2), 1, Cp)                       # (h, Cp, v_hd)
    wp_h = _pad_axis(params["wp"].reshape(num_heads, v_hd, C), 2, Cp)  # (h, v_hd, Cp)
    bp_p = _pad_axis(params["bp"], 1, Cp)                              # (1, Cp)

    if sr_ratio > 1:
        sr = sr_ratio
        Hk, Wk = H // sr, W // sr
        Nk = Hk * Wk
        ksq = sr * sr
        # fold eval-mode BatchNorm into the depthwise conv weights
        inv = params["bn_gamma"] * jax.lax.rsqrt(params["bn_var"] + 1e-5)   # (1, C)
        w_eff = _pad_axis(params["w_sr"] * inv, 1, Cp)                      # (ksq, Cp)
        b_eff = _pad_axis((params["b_sr"] - params["bn_mean"]) * inv
                          + params["bn_beta"], 1, Cp)                       # (1, Cp)
        # patches: (B, ksq, Nk, Cp) -> each tap slice is a dense (Nk, Cp) tile
        patches = (x_pad.reshape(B, Hk, sr, Wk, sr, Cp)
                   .transpose(0, 2, 4, 1, 3, 5)
                   .reshape(B, ksq, Nk, Cp))
        x_kv = pl.pallas_call(
            functools.partial(_sr_kernel, ksq=ksq),
            out_shape=jax.ShapeDtypeStruct((B, Nk, Cp), dtype),
            grid_spec=pltpu.PrefetchScalarGridSpec(
                num_scalar_prefetch=0,
                grid=(B,),
                in_specs=[
                    pl.BlockSpec((1, ksq, Nk, Cp), lambda b: (b, 0, 0, 0)),
                    pl.BlockSpec((ksq, Cp), lambda b: (0, 0)),
                    pl.BlockSpec((1, Cp), lambda b: (0, 0)),
                ],
                out_specs=pl.BlockSpec((1, Nk, Cp), lambda b: (b, 0, 0)),
            ),
            compiler_params=pltpu.CompilerParams(
                dimension_semantics=("parallel",)),
        )(patches, w_eff, b_eff)
    else:
        Nk = N
        x_kv = x_pad

    # query tile (full N at these sizes; 128-wide tiles when N is large+aligned)
    tq = N if (N <= 128 or N % 128 != 0) else 128
    n_qt = N // tq

    out_pad = pl.pallas_call(
        functools.partial(_attn_kernel, num_heads=num_heads),
        out_shape=jax.ShapeDtypeStruct((B, N, Cp), dtype),
        grid_spec=pltpu.PrefetchScalarGridSpec(
            num_scalar_prefetch=0,
            grid=(B, n_qt, num_heads),
            in_specs=[
                pl.BlockSpec((1, tq, Cp), lambda b, i, h: (b, i, 0)),     # x
                pl.BlockSpec((1, Nk, Cp), lambda b, i, h: (b, 0, 0)),     # x_kv
                pl.BlockSpec((1, Cp, qk_hd), lambda b, i, h: (h, 0, 0)),  # wq (head h)
                pl.BlockSpec((1, Cp, qk_hd), lambda b, i, h: (h, 0, 0)),  # wk (head h)
                pl.BlockSpec((1, Cp, v_hd), lambda b, i, h: (h, 0, 0)),   # wv (head h)
                pl.BlockSpec((1, v_hd, Cp), lambda b, i, h: (h, 0, 0)),   # wp rows (head h)
                pl.BlockSpec((1, Cp), lambda b, i, h: (0, 0)),            # proj bias
                pl.BlockSpec((1, tq, Nk), lambda b, i, h: (h, i, 0)),     # relative_pos
            ],
            out_specs=pl.BlockSpec((1, tq, Cp), lambda b, i, h: (b, i, 0)),
            scratch_shapes=[pltpu.VMEM((tq, Cp), jnp.float32)],
        ),
        compiler_params=pltpu.CompilerParams(
            dimension_semantics=("parallel", "parallel", "arbitrary")),
    )(x_pad, x_kv, wq_h, wk_h, wv_h, wp_h, bp_p, relative_pos)

    return out_pad[..., :C]


# ---------------------------------------------------------------------------
# Pure-JAX reference (mirrors the PyTorch forward)
# ---------------------------------------------------------------------------
def attention_reference(x, H, W, relative_pos, params, *, num_heads, sr_ratio):
    B, N, C = x.shape
    head_dim = C // num_heads
    qk_dim = params["wq"].shape[1]
    qk_hd = qk_dim // num_heads
    scale = head_dim ** (-0.5)

    q = (x @ params["wq"]).reshape(B, N, num_heads, qk_hd).transpose(0, 2, 1, 3)
    if sr_ratio > 1:
        s = sr_ratio
        Hk, Wk = H // s, W // s
        x_img = x.reshape(B, H, W, C)
        patches = (x_img.reshape(B, Hk, s, Wk, s, C)
                   .transpose(0, 1, 3, 2, 4, 5)
                   .reshape(B, Hk * Wk, s * s, C))
        y = jnp.einsum("bnkc,kc->bnc", patches, params["w_sr"]) + params["b_sr"]
        y = ((y - params["bn_mean"]) / jnp.sqrt(params["bn_var"] + 1e-5)
             * params["bn_gamma"] + params["bn_beta"])
        x_kv = y
    else:
        x_kv = x
    Nk = x_kv.shape[1]
    k = (x_kv @ params["wk"]).reshape(B, Nk, num_heads, qk_hd).transpose(0, 2, 1, 3)
    v = (x_kv @ params["wv"]).reshape(B, Nk, num_heads, head_dim).transpose(0, 2, 1, 3)
    attn = jnp.einsum("bhnd,bhmd->bhnm", q, k) * scale + relative_pos
    attn = jax.nn.softmax(attn, axis=-1)
    ctx = jnp.einsum("bhnm,bhmd->bhnd", attn, v).transpose(0, 2, 1, 3).reshape(B, N, C)
    return ctx @ params["wp"] + params["bp"]


# ---------------------------------------------------------------------------
if __name__ == "__main__":
    B, C = 2, 32
    H = W = 8
    N = H * W
    num_heads = 4
    sr_ratio = 2
    qk_ratio = 1
    qk_dim = C // qk_ratio
    Nk = (H // sr_ratio) * (W // sr_ratio)

    key = jax.random.PRNGKey(0)
    ks = jax.random.split(key, 12)

    x = jax.random.normal(ks[0], (B, N, C), jnp.float32)
    relative_pos = 0.1 * jax.random.normal(ks[1], (num_heads, N, Nk), jnp.float32)

    winit = lambda k, shape: (0.2 / np.sqrt(shape[0])) * jax.random.normal(k, shape, jnp.float32)
    params = {
        # linear weights stored (in_features, out_features)
        "wq": winit(ks[2], (C, qk_dim)),
        "wk": winit(ks[3], (C, qk_dim)),
        "wv": winit(ks[4], (C, C)),
        "wp": winit(ks[5], (C, C)),
        "bp": 0.1 * jax.random.normal(ks[6], (1, C), jnp.float32),
        # depthwise conv weight: (sr*sr, C)  == PyTorch (C, 1, sr, sr) flattened
        "w_sr": winit(ks[7], (sr_ratio * sr_ratio, C)),
        "b_sr": 0.1 * jax.random.normal(ks[8], (1, C), jnp.float32),
        # BatchNorm2d (eval mode) parameters / running stats
        "bn_gamma": 1.0 + 0.1 * jax.random.normal(ks[9], (1, C), jnp.float32),
        "bn_beta": 0.1 * jax.random.normal(ks[10], (1, C), jnp.float32),
        "bn_mean": 0.1 * jax.random.normal(ks[11], (1, C), jnp.float32),
        "bn_var": jnp.full((1, C), 1.0, jnp.float32),
    }

    out = attention_forward(x, H, W, relative_pos, params,
                            num_heads=num_heads, sr_ratio=sr_ratio)
    jax.block_until_ready(out)

    ref = attention_reference(x, H, W, relative_pos, params,
                              num_heads=num_heads, sr_ratio=sr_ratio)
    np.testing.assert_allclose(np.asarray(out), np.asarray(ref),
                               rtol=2e-3, atol=2e-3)
    print("KERNEL_OK")
</pallas_src>

<mosaic_0001>
module attributes {stable_mosaic.version = 11 : i64} {
  func.func @_sr_kernel(%arg0: i32, %arg1: memref<1x4x16x128xf32, #tpu.memory_space<vmem>>, %arg2: memref<4x128xf32, #tpu.memory_space<vmem>>, %arg3: memref<1x128xf32, #tpu.memory_space<vmem>>, %arg4: memref<1x16x128xf32, #tpu.memory_space<vmem>>) attributes {dimension_semantics = [#tpu.dimension_semantics<parallel>], iteration_bounds = array<i64: 2>, scalar_prefetch = 0 : i64, scratch_operands = 0 : i64, tpu.core_type = #tpu.core_type<tc>, window_params = [{transform_indices = @transform_0, window_bounds = array<i64: 1, 4, 16, 128>}, {pipeline_mode = #tpu.pipeline_mode<synchronous>, transform_indices = @transform_1, window_bounds = array<i64: 4, 128>}, {pipeline_mode = #tpu.pipeline_mode<synchronous>, transform_indices = @transform_2, window_bounds = array<i64: 1, 128>}, {transform_indices = @transform_3, window_bounds = array<i64: 1, 16, 128>}]} {
    %c0 = arith.constant 0 : index
    %c0_0 = arith.constant 0 : index
    %0 = vector.load %arg2[%c0, %c0_0] : memref<4x128xf32, #tpu.memory_space<vmem>>, vector<4x128xf32>
    %c0_1 = arith.constant 0 : index
    %c0_2 = arith.constant 0 : index
    %1 = vector.load %arg3[%c0_1, %c0_2] : memref<1x128xf32, #tpu.memory_space<vmem>>, vector<1x128xf32>
    %c0_3 = arith.constant 0 : index
    %c0_4 = arith.constant 0 : index
    %c0_5 = arith.constant 0 : index
    %c0_6 = arith.constant 0 : index
    %2 = vector.load %arg1[%c0_3, %c0_4, %c0_5, %c0_6] : memref<1x4x16x128xf32, #tpu.memory_space<vmem>>, vector<1x1x16x128xf32>
    %3 = vector.shape_cast %2 : vector<1x1x16x128xf32> to vector<16x128xf32>
    %4 = vector.extract_strided_slice %0 {offsets = [0, 0], sizes = [1, 128], strides = [1, 1]} : vector<4x128xf32> to vector<1x128xf32>
    %5 = vector.broadcast %4 : vector<1x128xf32> to vector<16x128xf32>
    %6 = arith.mulf %3, %5 : vector<16x128xf32>
    %7 = vector.broadcast %1 : vector<1x128xf32> to vector<16x128xf32>
    %8 = arith.addf %7, %6 : vector<16x128xf32>
    %c0_7 = arith.constant 0 : index
    %c1 = arith.constant 1 : index
    %c0_8 = arith.constant 0 : index
    %c0_9 = arith.constant 0 : index
    %9 = vector.load %arg1[%c0_7, %c1, %c0_8, %c0_9] : memref<1x4x16x128xf32, #tpu.memory_space<vmem>>, vector<1x1x16x128xf32>
    %10 = vector.shape_cast %9 : vector<1x1x16x128xf32> to vector<16x128xf32>
    %11 = vector.extract_strided_slice %0 {offsets = [1, 0], sizes = [1, 128], strides = [1, 1]} : vector<4x128xf32> to vector<1x128xf32>
    %12 = vector.broadcast %11 : vector<1x128xf32> to vector<16x128xf32>
    %13 = arith.mulf %10, %12 : vector<16x128xf32>
    %14 = arith.addf %8, %13 : vector<16x128xf32>
    %c0_10 = arith.constant 0 : index
    %c2 = arith.constant 2 : index
    %c0_11 = arith.constant 0 : index
    %c0_12 = arith.constant 0 : index
    %15 = vector.load %arg1[%c0_10, %c2, %c0_11, %c0_12] : memref<1x4x16x128xf32, #tpu.memory_space<vmem>>, vector<1x1x16x128xf32>
    %16 = vector.shape_cast %15 : vector<1x1x16x128xf32> to vector<16x128xf32>
    %17 = vector.extract_strided_slice %0 {offsets = [2, 0], sizes = [1, 128], strides = [1, 1]} : vector<4x128xf32> to vector<1x128xf32>
    %18 = vector.broadcast %17 : vector<1x128xf32> to vector<16x128xf32>
    %19 = arith.mulf %16, %18 : vector<16x128xf32>
    %20 = arith.addf %14, %19 : vector<16x128xf32>
    %c0_13 = arith.constant 0 : index
    %c3 = arith.constant 3 : index
    %c0_14 = arith.constant 0 : index
    %c0_15 = arith.constant 0 : index
    %21 = vector.load %arg1[%c0_13, %c3, %c0_14, %c0_15] : memref<1x4x16x128xf32, #tpu.memory_space<vmem>>, vector<1x1x16x128xf32>
    %22 = vector.shape_cast %21 : vector<1x1x16x128xf32> to vector<16x128xf32>
    %23 = vector.extract_strided_slice %0 {offsets = [3, 0], sizes = [1, 128], strides = [1, 1]} : vector<4x128xf32> to vector<1x128xf32>
    %24 = vector.broadcast %23 : vector<1x128xf32> to vector<16x128xf32>
    %25 = arith.mulf %22, %24 : vector<16x128xf32>
    %26 = arith.addf %20, %25 : vector<16x128xf32>
    %c0_16 = arith.constant 0 : index
    %c0_17 = arith.constant 0 : index
    %c0_18 = arith.constant 0 : index
    %27 = vector.load %arg4[%c0_16, %c0_17, %c0_18] : memref<1x16x128xf32, #tpu.memory_space<vmem>>, vector<1x16x128xf32>
    %28 = vector.shape_cast %27 : vector<1x16x128xf32> to vector<16x128xf32>
    %29 = vector.shape_cast %26 : vector<16x128xf32> to vector<1x16x128xf32>
    tpu.vector_store %arg4[%c0_16, %c0_17, %c0_18], %29 {strides = array<i32>} : memref<1x16x128xf32, #tpu.memory_space<vmem>>, vector<1x16x128xf32>,
    return
  }
  func.func @transform_0(%arg0: i32) -> (i32, i32, i32, i32) {
    %c0_i32 = arith.constant 0 : i32
    %c0_i32_0 = arith.constant 0 : i32
    %c0_i32_1 = arith.constant 0 : i32
    %c0_i32_2 = arith.constant 0 : i32
    return %arg0, %c0_i32, %c0_i32_0, %c0_i32_1 : i32, i32, i32, i32
  }
  func.func @transform_1(%arg0: i32) -> (i32, i32) {
    %c0_i32 = arith.constant 0 : i32
    %c0_i32_0 = arith.constant 0 : i32
    %c0_i32_1 = arith.constant 0 : i32
    return %c0_i32, %c0_i32_0 : i32, i32
  }
  func.func @transform_2(%arg0: i32) -> (i32, i32) {
    %c0_i32 = arith.constant 0 : i32
    %c0_i32_0 = arith.constant 0 : i32
    %c0_i32_1 = arith.constant 0 : i32
    return %c0_i32, %c0_i32_0 : i32, i32
  }
  func.func @transform_3(%arg0: i32) -> (i32, i32, i32) {
    %c0_i32 = arith.constant 0 : i32
    %c0_i32_0 = arith.constant 0 : i32
    %c0_i32_1 = arith.constant 0 : i32
    return %arg0, %c0_i32, %c0_i32_0 : i32, i32, i32
  }
}

</mosaic_0001>

<llo_original>
// kernel: tpu_custom_call.1
$region0: #{tpu_custom_call.1}
  #allocation0 [shape = 'u32[]', space=smem, size = 0x4, offset = 0x4, fixed_abs, tag = 'smem constant byte address 0x4 - core index']
  #allocation1 [shape = 'u32[144,128]{1,0:T(1,128)}', space=vmem, size = 0x12000, scoped, tag = 'internal scratch']
  %s0 = inlined_call_operand.hbm [shape: f32[2,4,16,128], index: 0, kind: input, shape index: {}]
  %s1 = inlined_call_operand.hbm [shape: f32[4,128], index: 1, kind: input, shape index: {}]
  %s2 = inlined_call_operand.vmem [shape: f32[1,128], index: 2, kind: input, shape index: {}]
  %s3 = inlined_call_operand.hbm [shape: f32[2,16,128], index: 3, kind: output, shape index: {}]
  %s4 = sld [smem:[#allocation0]]
  $region53: #{tpu_custom_call.1} parent=0
    _
  %s6 = ssub.s32 1, %s4
  %s7 = scalar_select 0, %s6, %s4
  $region1: #{tpu_custom_call.1} parent=0
    #allocation2 [shape = 'u8[65536]{0}', space=vmem, size = 0x10000, scoped, tag = 'input window, operand 0']
    #allocation3 [shape = 's32[2]{0}', space=sflag, size = 0x8, scoped, tag = 'scoped memory for tpu_custom_call.1']
    #allocation4 [shape = 's32[2]{0}', space=sflag, size = 0x8, scoped, tag = 'scoped memory for tpu_custom_call.1']
    #allocation5 [shape = 'u8[2048]{0}', space=vmem, size = 0x800, scoped, tag = 'input window, operand 1, single buffered']
    #allocation6 [shape = 's32[1]{0}', space=sflag, size = 0x4, scoped, tag = 'scoped memory for tpu_custom_call.1']
    #allocation7 [shape = 'u8[16384]{0}', space=vmem, size = 0x4000, scoped, tag = 'output window, operand 0']
    %8 = vsyncpa [#allocation3], 0
    %s9 = scalar_lea.sflag [#allocation3], 1
    %10 = vsyncpa %s9, 0
    %11 = vsyncpa [#allocation6], 0
    %12 = vsyncpa [#allocation4], 0
    %s13 = scalar_lea.sflag [#allocation4], 1
    %14 = vsyncpa %s13, 0
    loop: start=0, step=1, limit=4
    $region2: #{tpu_custom_call.1} parent=1 // loop_pre_header
      _
    $region3: #{tpu_custom_call.1} parent=1 // loop_header
      %s16 = sphi 0, %s20
      %p17 = scmp.ge.s32.totalorder %s16, 4
      %s26 = sphi 0, %s28
      %s29 = sphi 0, %s26
      %s30 = sphi 0, %s29
      %s46 = sphi 0, %s30
      %s50 = sphi 0, %s50
      %s52 = sphi 0, %s50
      %s53 = sphi 0, %s52
      %s67 = sphi 0, %s53
      %s71 = sphi 0, %s71
      %s73 = sphi 0, %s71
      %s74 = sphi 0, %s73
      %s88 = sphi 0, %s74
      %s94 = sphi 0, %s96
      %s97 = sphi 0, %s94
      %s98 = sphi 0, %s97
      %s114 = sphi 0, %s98
    $region4: #{tpu_custom_call.1} parent=1 // loop_header_branch
      %19 = sbr.rel (%p17) target = $region8
    $region5: #{tpu_custom_call.1} parent=1 // loop_body
      %s21 = ssub.s32 %s16, 1
      %s22 = ssub.s32 %s16, 2
      %s23 = sadd.s32 %s16, 1
      %s24 = ssub.s32 %s16, %s23
      %p25 = scmp.eq.s32.totalorder %s24, 0
      %s27 = sadd.s32 %s26, 1
      %s28 = scalar_select %p25, %s26, %s27
      %p31 = pneg %p25
      %p32 = scmp.eq.s32.totalorder %s16, 1
      %p33 = por %p31, %p32
      %p34 = scmp.ne.s32.totalorder %s26, %s29
      %p35 = scmp.eq.s32.totalorder %s16, 0
      %p36 = por %p34, %p35
      %p37 = scmp.ne.s32.totalorder %s26, %s29
      %p38 = scmp.eq.s32.totalorder %s21, 1
      %p39 = por %p37, %p38
      %p40 = scmp.ne.s32.totalorder %s29, %s30
      %p41 = scmp.eq.s32.totalorder %s21, 0
      %p42 = por %p40, %p41
      %p43 = scmp.ne.s32.totalorder %s29, %s30
      %p44 = scmp.eq.s32.totalorder %s22, 1
      %p45 = por %p43, %p44
      %p47 = scmp.ne.s32.totalorder %s30, %s46
      %p48 = scmp.eq.s32.totalorder %s22, 0
      %p49 = por %p47, %p48
      %s51 = sadd.s32 %s50, 1
      %p54 = scmp.eq.s32.totalorder %s16, 1
      %p55 = scmp.ne.s32.totalorder %s50, %s52
      %p56 = scmp.eq.s32.totalorder %s16, 0
      %p57 = por %p55, %p56
      %p58 = scmp.ne.s32.totalorder %s50, %s52
      %p59 = scmp.eq.s32.totalorder %s21, 1
      %p60 = por %p58, %p59
      %p61 = scmp.ne.s32.totalorder %s52, %s53
      %p62 = scmp.eq.s32.totalorder %s21, 0
      %p63 = por %p61, %p62
      %p64 = scmp.ne.s32.totalorder %s52, %s53
      %p65 = scmp.eq.s32.totalorder %s22, 1
      %p66 = por %p64, %p65
      %p68 = scmp.ne.s32.totalorder %s53, %s67
      %p69 = scmp.eq.s32.totalorder %s22, 0
      %p70 = por %p68, %p69
      %s72 = sadd.s32 %s71, 1
      %p75 = scmp.eq.s32.totalorder %s16, 1
      %p76 = scmp.ne.s32.totalorder %s71, %s73
      %p77 = scmp.eq.s32.totalorder %s16, 0
      %p78 = por %p76, %p77
      %p79 = scmp.ne.s32.totalorder %s71, %s73
      %p80 = scmp.eq.s32.totalorder %s21, 1
      %p81 = por %p79, %p80
      %p82 = scmp.ne.s32.totalorder %s73, %s74
      %p83 = scmp.eq.s32.totalorder %s21, 0
      %p84 = por %p82, %p83
      %p85 = scmp.ne.s32.totalorder %s73, %s74
      %p86 = scmp.eq.s32.totalorder %s22, 1
      %p87 = por %p85, %p86
      %p89 = scmp.ne.s32.totalorder %s74, %s88
      %p90 = scmp.eq.s32.totalorder %s22, 0
      %p91 = por %p89, %p90
      %s92 = ssub.s32 %s16, %s23
      %p93 = scmp.eq.s32.totalorder %s92, 0
      %s95 = sadd.s32 %s94, 1
      %s96 = scalar_select %p93, %s94, %s95
      %p99 = pneg %p93
      %p100 = scmp.eq.s32.totalorder %s16, 1
      %p101 = por %p99, %p100
      %p102 = scmp.ne.s32.totalorder %s94, %s97
      %p103 = scmp.eq.s32.totalorder %s16, 0
      %p104 = por %p102, %p103
      %p105 = scmp.ne.s32.totalorder %s94, %s97
      %p106 = scmp.eq.s32.totalorder %s21, 1
      %p107 = por %p105, %p106
      %p108 = scmp.ne.s32.totalorder %s97, %s98
      %p109 = scmp.eq.s32.totalorder %s21, 0
      %p110 = por %p108, %p109
      %p111 = scmp.ne.s32.totalorder %s97, %s98
      %p112 = scmp.eq.s32.totalorder %s22, 1
      %p113 = por %p111, %p112
      %p115 = scmp.ne.s32.totalorder %s98, %s114
      %p116 = scmp.eq.s32.totalorder %s22, 0
      %p117 = por %p115, %p116
      %p118 = scmp.le.s32.totalorder 1, %s16
      %p119 = scmp.lt.s32.totalorder %s16, 3
      %p120 = pnand %p118, %p119
      %p121 = pneg %p120
      // Predicated region
      $region9: #{tpu_custom_call.1} parent=5 // pred_check
        _
      $region10: #{tpu_custom_call.1} parent=5 // pred_check_branch
        %123 = sbr.rel (%p120) target = $region12
      $region11: #{tpu_custom_call.1} parent=5 // pred_region
        %s124 = ssub.s32 %s16, 1
        // Predicated region
        $region13: #{tpu_custom_call.1} parent=11 // pred_check
          %p125 = pneg %p63
        $region14: #{tpu_custom_call.1} parent=11 // pred_check_branch
          %127 = sbr.rel (%p125) target = $region16
        $region15: #{tpu_custom_call.1} parent=11 // pred_region
          %s129 = ssub.s32 64, 64
          %130 = vsyncadd [#allocation6], %s129
          %s132 = sshll.u32 [#allocation5], 4
          %s133 = int_to_ptr.vmem [resolvable:$true] %s132
          %135 = dma.hbm_to_vmem [thread:$0]  %s1, 64, %s133, [#allocation6]
        $region16: #{tpu_custom_call.1} parent=11 // pred_fallthru
          _
        // Predicated region
        $region17: #{tpu_custom_call.1} parent=11 // pred_check
          %p136 = pneg %p84
        $region18: #{tpu_custom_call.1} parent=11 // pred_check_branch
          %138 = sbr.rel (%p136) target = $region20
        $region19: #{tpu_custom_call.1} parent=11 // pred_region
          _
        $region20: #{tpu_custom_call.1} parent=11 // pred_fallthru
          _
      $region12: #{tpu_custom_call.1} parent=5 // pred_fallthru
        _
      %p139 = scmp.lt.s32.totalorder %s16, 2
      // Predicated region
      $region21: #{tpu_custom_call.1} parent=5 // pred_check
        %p140 = pneg %p139
      $region22: #{tpu_custom_call.1} parent=5 // pred_check_branch
        %142 = sbr.rel (%p140) target = $region24
      $region23: #{tpu_custom_call.1} parent=5 // pred_region
        // Predicated region
        $region25: #{tpu_custom_call.1} parent=23 // pred_check
          %p143 = pneg %p36
        $region26: #{tpu_custom_call.1} parent=23 // pred_check_branch
          %145 = sbr.rel (%p143) target = $region28
        $region27: #{tpu_custom_call.1} parent=23 // pred_region
          %s146 = sand.u32 %s26, 1
          %s147 = scalar_lea.sflag [#allocation3], %s146
          %s148 = sand.u32 %s26, 1
          %s149 = smul.addr %s148, 64
          %s150 = scalar_lea.vmem [#allocation2], %s149
          %s152 = ssub.s32 1024, 1024
          %153 = vsyncadd %s147, %s152
          %s154 = smul.addr %s16, 8
          %s155 = smul.addr %s154, 128
          %s156 = scalar_lea.hbm %s0, %s155
          %s157 = sshll.u32 %s150, 4
          %s158 = int_to_ptr.vmem [resolvable:$true] %s157
          %163 = dma.hbm_to_vmem [thread:$0]  %s156, 1024, %s158, %s147, 128, 128, 8
        $region28: #{tpu_custom_call.1} parent=23 // pred_fallthru
          _
      $region24: #{tpu_custom_call.1} parent=5 // pred_fallthru
        _
      %p164 = scmp.le.s32.totalorder 1, %s16
      %p165 = scmp.lt.s32.totalorder %s16, 3
      %p166 = pnand %p164, %p165
      %p167 = pneg %p166
      // Predicated region
      $region29: #{tpu_custom_call.1} parent=5 // pred_check
        _
      $region30: #{tpu_custom_call.1} parent=5 // pred_check_branch
        %169 = sbr.rel (%p166) target = $region32
      $region31: #{tpu_custom_call.1} parent=5 // pred_region
        %s170 = ssub.s32 %s16, 1
        %s171 = sand.u32 %s29, 1
        %s172 = scalar_lea.sflag [#allocation3], %s171
        %s173 = sand.u32 %s29, 1
        %s174 = smul.addr %s173, 64
        %s175 = scalar_lea.vmem [#allocation2], %s174
        // Predicated region
        $region33: #{tpu_custom_call.1} parent=31 // pred_check
          %p176 = pneg %p42
        $region34: #{tpu_custom_call.1} parent=31 // pred_check_branch
          %178 = sbr.rel (%p176) target = $region36
        $region35: #{tpu_custom_call.1} parent=31 // pred_region
          %179 = dma.done %s172, 1024
        $region36: #{tpu_custom_call.1} parent=31 // pred_fallthru
          _
        // Predicated region
        $region37: #{tpu_custom_call.1} parent=31 // pred_check
          %p180 = pneg %p63
        $region38: #{tpu_custom_call.1} parent=31 // pred_check_branch
          %182 = sbr.rel (%p180) target = $region40
        $region39: #{tpu_custom_call.1} parent=31 // pred_region
          %183 = dma.done [#allocation6], 64
        $region40: #{tpu_custom_call.1} parent=31 // pred_fallthru
          _
        %s184 = sand.u32 %s29, 1
        %s185 = scalar_lea.sflag [#allocation3], %s184
        %s186 = sand.u32 %s29, 1
        %s187 = smul.addr %s186, 64
        %s188 = scalar_lea.vmem [#allocation2], %s187
        %p189 = pneg %p42
        %p190 = pneg %p39
        %p191 = pneg %p63
        %p192 = pneg %p60
        %p193 = pneg %p84
        %p194 = pneg %p81
        %p195 = pneg %p110
        %p196 = pneg %p107
        %s197 = sand.u32 %s97, 1
        %s198 = scalar_lea.sflag [#allocation4], %s197
        %s199 = sand.u32 %s97, 1
        %s200 = smul.addr %s199, 16
        %s201 = scalar_lea.vmem [#allocation7], %s200
        %v202 = vld [vmem:[#allocation5] sm:$0xf]
        %v203 = vld [vmem:[%s2] sm:$0x1]
        %v204 = vld [vmem:[%s175] sm:$0xff]
        %v205 = vld [vmem:[%s175 + $0x8] sm:$0xff]
        %v206 = vlaneseq
        %v207 = vshrl.u32 %v206, 7
        %v208 = vsub.s32 0, %v207
        %v209 = vrot.slane %v202, %v208
        %v210 = vmul.f32 %v204, %v209
        %v211 = vmul.f32 %v205, %v209
        %v213 = vlaneseq
        %v214 = vshrl.u32 %v213, 7
        %v215 = vsub.s32 0, %v214
        %v216 = vrot.slane %v203, %v215
        %v218 = vadd.f32 %v216, %v210
        %v219 = vadd.f32 %v216, %v211
        %s220 = scalar_lea.vmem %s175, 16 [#allocation2]
        %v221 = vld [vmem:[%s220] sm:$0xff]
        %v222 = vld [vmem:[%s220 + $0x8] sm:$0xff]
        %v223 = vlaneseq
        %v224 = vshrl.u32 %v223, 7
        %v225 = vsub.s32 1, %v224
        %v226 = vrot.slane %v202, %v225
        %v227 = vmul.f32 %v221, %v226
        %v228 = vmul.f32 %v222, %v226
        %v229 = vadd.f32 %v218, %v227
        %v230 = vadd.f32 %v219, %v228
        %s231 = scalar_lea.vmem %s175, 32 [#allocation2]
        %v232 = vld [vmem:[%s231] sm:$0xff]
        %v233 = vld [vmem:[%s231 + $0x8] sm:$0xff]
        %v234 = vlaneseq
        %v235 = vshrl.u32 %v234, 7
        %v236 = vsub.s32 2, %v235
        %v237 = vrot.slane %v202, %v236
        %v238 = vmul.f32 %v232, %v237
        %v239 = vmul.f32 %v233, %v237
        %v240 = vadd.f32 %v229, %v238
        %v241 = vadd.f32 %v230, %v239
        %s242 = scalar_lea.vmem %s175, 48 [#allocation2]
        %v243 = vld [vmem:[%s242] sm:$0xff]
        %v244 = vld [vmem:[%s242 + $0x8] sm:$0xff]
        %v245 = vlaneseq
        %v246 = vshrl.u32 %v245, 7
        %v247 = vsub.s32 3, %v246
        %v248 = vrot.slane %v202, %v247
        %v249 = vmul.f32 %v243, %v248
        %v250 = vmul.f32 %v244, %v248
        %v251 = vadd.f32 %v240, %v249
        %v252 = vadd.f32 %v241, %v250
        %253 = vst [vmem:[%s201] sm:$0xff] %v251
        %254 = vst [vmem:[%s201 + $0x8] sm:$0xff] %v252
        %s255 = sand.u32 %s97, 1
        %s256 = scalar_lea.sflag [#allocation4], %s255
        %s257 = sand.u32 %s97, 1
        %s258 = smul.addr %s257, 16
        %s259 = scalar_lea.vmem [#allocation7], %s258
        // Predicated region
        $region41: #{tpu_custom_call.1} parent=31 // pred_check
          %p260 = pneg %p107
        $region42: #{tpu_custom_call.1} parent=31 // pred_check_branch
          %262 = sbr.rel (%p260) target = $region44
        $region43: #{tpu_custom_call.1} parent=31 // pred_region
          %s264 = ssub.s32 256, 256
          %265 = vsyncadd %s256, %s264
          %s266 = smul.addr %s21, 2
          %s267 = smul.addr %s266, 128
          %s268 = scalar_lea.hbm %s3, %s267
          %s269 = sshll.u32 %s259, 4
          %s270 = int_to_ptr.vmem [resolvable:$true] %s269
          %275 = dma.vmem_to_hbm [thread:$0]  %s270, 256, %s268, %s256, 128, 128, 8
        $region44: #{tpu_custom_call.1} parent=31 // pred_fallthru
          _
      $region32: #{tpu_custom_call.1} parent=5 // pred_fallthru
        _
      %p276 = scmp.le.s32.totalorder 2, %s16
      // Predicated region
      $region45: #{tpu_custom_call.1} parent=5 // pred_check
        %p277 = pneg %p276
      $region46: #{tpu_custom_call.1} parent=5 // pred_check_branch
        %279 = sbr.rel (%p277) target = $region48
      $region47: #{tpu_custom_call.1} parent=5 // pred_region
        %s280 = ssub.s32 %s16, 2
        // Predicated region
        $region49: #{tpu_custom_call.1} parent=47 // pred_check
          %p281 = pneg %p113
        $region50: #{tpu_custom_call.1} parent=47 // pred_check_branch
          %283 = sbr.rel (%p281) target = $region52
        $region51: #{tpu_custom_call.1} parent=47 // pred_region
          %s284 = sand.u32 %s98, 1
          %s285 = scalar_lea.sflag [#allocation4], %s284
          %s286 = sand.u32 %s98, 1
          %s287 = smul.addr %s286, 16
          %s288 = scalar_lea.vmem [#allocation7], %s287
          %289 = dma.done %s285, 256
        $region52: #{tpu_custom_call.1} parent=47 // pred_fallthru
          _
      $region48: #{tpu_custom_call.1} parent=5 // pred_fallthru
        _
    $region6: #{tpu_custom_call.1} parent=1 // loop_footer
      %s20 = sadd.s32 1, %s16
    $region7: #{tpu_custom_call.1} parent=1 // loop_footer_branch
      %15 = sbr.rel target = $region3
    $region8: #{tpu_custom_call.1} parent=1 // loop_exit
      _
    %290 = vsyncpa [#allocation3], 1
    %s291 = scalar_lea.sflag [#allocation3], 1
    %292 = vsyncpa %s291, 1
    %293 = vsyncpa [#allocation6], 1
    %294 = vsyncpa [#allocation4], 1
    %s295 = scalar_lea.sflag [#allocation4], 1
    %296 = vsyncpa %s295, 1

</llo_original>
